<compile_context>
chip_gen: v7x
topology: tpu7x:2x2x1
jax: 0.10.0
libtpu: 0.0.40
codegen_flags: <defaults>
</compile_context>

<pallas_src>
import math
import jax
import jax.numpy as jnp
from jax import lax
from jax.experimental import pallas as pl
from jax.experimental.pallas import tpu as pltpu

# -------- problem sizes (small, consistent with the module) --------
B, C, H, W = 2, 4, 16, 16
T = 1000                      # num_timesteps
KH = KW = 3
BC = B * C                    # 8   -> sublane dim (one full native sublane group)
HW = H * W                    # 256 -> lane dim (two full 128-lane vregs per row)
NTAP = KH * KW                # 9


# -------------------- schedule (glue, matches cosine_beta_schedule) --------------------
def cosine_beta_schedule(timesteps, s=0.008):
    steps = timesteps + 1
    x = jnp.linspace(0.0, timesteps, steps)
    ac = jnp.cos((x / steps + s) / (1 + s) * math.pi * 0.5) ** 2
    ac = ac / ac[0]
    betas = 1.0 - ac[1:] / ac[:-1]
    return jnp.clip(betas, 0.0, 0.999)


# -------------------- Pallas kernel --------------------
def _diffusion_loss_kernel(side_ref, m_ref, x_ref, n_ref, loss_ref):
    """Whole batch in one invocation (grid-less).

    side_ref : (B*C, 3) f32  — col 0: sqrt_alphas_cumprod[t] per row,
                                col 1: sqrt(1-alphas_cumprod)[t] per row,
                                col 2: time embedding + conv bias per (b, c_out).
    m_ref    : (B*C, 9*B*C) bf16 block-diagonal-over-batch conv weight matrix.
    x_ref/n_ref : (B*C, H*W) f32, row = b*C + c, lane = h*W + w   (lane-dense).
    loss_ref : (1, 1) SMEM scalar output (mean L1 loss).
    """
    x = x_ref[...]                                        # (BC, HW)
    noise = n_ref[...]                                    # (BC, HW)
    side = side_ref[...]                                  # (BC, 3)
    ca = side[:, 0:1]
    cb = side[:, 1:2]
    temb = side[:, 2:3]

    # q_sample: per-row scalar broadcast along lanes.
    xn = ca * x + cb * noise                              # (BC, HW)

    # One shared (1, HW) lane iota for every tap mask; W is a power of two.
    lane = lax.broadcasted_iota(jnp.int32, (1, HW), 1)
    w_idx = lane & (W - 1)

    # Nine taps: one XLU lane-rotate + at most ONE merged select each.
    # Wrap-around of the rotate (vertical out-of-range) and horizontal cross-row
    # wrap are both killed by a single precomputed mask -> exact "same" zero padding.
    taps = []
    for dy in range(KH):
        for dx in range(KW):
            s = (dy - 1) * W + (dx - 1)                   # tap[:, l] = xn[:, l + s]
            t = xn if s == 0 else pltpu.roll(xn, (-s) % HW, axis=1)
            m = None
            if dx == 0:                                   # needs (h, w-1)
                m = w_idx >= 1
            elif dx == 2:                                 # needs (h, w+1)
                m = w_idx < (W - 1)
            if s > 0:                                     # needs l + s < HW
                rng = lane < (HW - s)
                m = rng if m is None else (m & rng)
            elif s < 0:                                   # needs l + s >= 0
                rng = lane >= (-s)
                m = rng if m is None else (m & rng)
            if m is not None:
                t = jnp.where(m, t, 0.0)
            taps.append(t)

    # bf16 only at the MXU boundary (taps stay f32 for the VPU; v5e has no bf16 VPU).
    patches = jnp.concatenate(taps, axis=0).astype(jnp.bfloat16)   # (9*BC, HW)

    # Channel mixing: one tiny bf16 MXU dot (MXU is otherwise idle), f32 accumulate.
    pred = jnp.dot(m_ref[...], patches,
                   preferred_element_type=jnp.float32)    # (BC, HW)
    pred = pred + temb                                    # broadcast (BC,1) time bias

    # Single cross-lane/sublane reduction for the whole batch.
    loss_ref[0, 0] = jnp.sum(jnp.abs(noise - pred)) * (1.0 / float(B * C * H * W))


def gaussian_diffusion_loss(x, coef_a, coef_b, w, temb, noise):
    """x, noise: (B,C,H,W) f32;  coef_a/coef_b: (B,);  w: (KH,KW,Cin,Cout);  temb: (B,C).

    Returns the scalar L1 diffusion loss (mean |noise - denoise_fn(q_sample(x,t), t)|).
    """
    # Lane-dense relayout: free contiguous reshapes, no padding, no extra HBM arrays.
    x2 = x.reshape(BC, HW)
    n2 = noise.reshape(BC, HW)

    # ONE packed side input (one DMA instead of three):
    #   [:,0]=sqrt_ac[t] per row, [:,1]=sqrt(1-ac)[t] per row, [:,2]=temb+bias per (b,c).
    side = jnp.stack(
        [jnp.repeat(coef_a, C), jnp.repeat(coef_b, C), temb.reshape(BC)],
        axis=-1,
    ).astype(jnp.float32)                                 # (BC, 3)

    # Conv weights -> block-diagonal (over batch) mixing matrix, shipped in bf16:
    #   m_all[b*C+co, k*BC + b2*C + ci] = w[k, ci, co] * (b == b2)
    # NOTE: in a training loop, build this once per step OUTSIDE the per-call jit
    # region (it depends only on the conv weights), not once per kernel call.
    w9 = w.reshape(NTAP, C, C)                            # [tap, ci, co]
    m_all = jnp.einsum('ab,kio->aokbi', jnp.eye(B, dtype=jnp.float32), w9)
    m_all = m_all.reshape(BC, NTAP * BC).astype(jnp.bfloat16)

    vmem = pl.BlockSpec(memory_space=pltpu.MemorySpace.VMEM)
    loss = pl.pallas_call(
        _diffusion_loss_kernel,
        out_shape=jax.ShapeDtypeStruct((1, 1), jnp.float32),
        in_specs=[vmem, vmem, vmem, vmem],
        out_specs=pl.BlockSpec(memory_space=pltpu.MemorySpace.SMEM),
    )(side, m_all, x2, n2)
    return loss[0, 0]


# -------------------- pure-JAX reference (for self-check) --------------------
def reference_loss(x, coef_a, coef_b, w, temb, noise):
    x_noisy = coef_a[:, None, None, None] * x + coef_b[:, None, None, None] * noise
    w_oihw = jnp.transpose(w, (3, 2, 0, 1))               # (Cout, Cin, KH, KW)
    conv = lax.conv_general_dilated(
        x_noisy, w_oihw, window_strides=(1, 1), padding=((1, 1), (1, 1)),
        dimension_numbers=("NCHW", "OIHW", "NCHW"))
    pred = conv + temb[:, :, None, None]
    return jnp.mean(jnp.abs(noise - pred))


if __name__ == "__main__":
    key = jax.random.PRNGKey(0)
    kx, kt, kn, kw, kb, ke = jax.random.split(key, 6)

    # module buffers (forward only needs these two)
    betas = cosine_beta_schedule(T)
    alphas_cumprod = jnp.cumprod(1.0 - betas)
    sqrt_ac = jnp.sqrt(alphas_cumprod)
    sqrt_1mac = jnp.sqrt(1.0 - alphas_cumprod)

    # deterministic synthetic denoise_fn parameters
    w = (jax.random.normal(kw, (KH, KW, C, C), jnp.float32) * 0.05)     # conv weight
    conv_bias = jax.random.normal(kb, (C,), jnp.float32) * 0.05
    temb_table = jax.random.normal(ke, (T, C), jnp.float32) * 0.05

    # forward(): inputs, random t and noise (RNG is plain-JAX glue, as in the module)
    x = jax.random.normal(kx, (B, C, H, W), jnp.float32)
    t = jax.random.randint(kt, (B,), 0, T)
    noise = jax.random.normal(kn, (B, C, H, W), jnp.float32)

    # extract(...) gathers -> per-batch scalars / per-batch time bias (glue)
    coef_a = sqrt_ac[t].astype(jnp.float32)
    coef_b = sqrt_1mac[t].astype(jnp.float32)
    temb = temb_table[t] + conv_bias[None, :]                            # (B, C)

    loss = gaussian_diffusion_loss(x, coef_a, coef_b, w, temb, noise)
    loss = jax.block_until_ready(loss)

    ref = jax.block_until_ready(reference_loss(x, coef_a, coef_b, w, temb, noise))
    assert jnp.isfinite(loss), "non-finite loss"
    # Tolerance covers the bf16 cast of patches/weights at the MXU boundary (weights
    # ~0.05, K_eff=36 -> loss drift << 1e-3); any indexing/shift/mask logic error
    # would be orders of magnitude larger.
    assert jnp.allclose(loss, ref, rtol=5e-3, atol=5e-3), (loss, ref)

    print("KERNEL_OK")
</pallas_src>

<mosaic_0001>
module attributes {stable_mosaic.version = 11 : i64} {
  func.func @_diffusion_loss_kernel(%arg0: memref<8x3xf32, #tpu.memory_space<vmem>>, %arg1: memref<8x72xbf16, #tpu.memory_space<vmem>>, %arg2: memref<8x256xf32, #tpu.memory_space<vmem>>, %arg3: memref<8x256xf32, #tpu.memory_space<vmem>>, %arg4: memref<1x1xf32, #tpu.memory_space<smem>>) attributes {dimension_semantics = [], scalar_prefetch = 0 : i64, scratch_operands = 0 : i64, tpu.core_type = #tpu.core_type<tc>} {
    %c0 = arith.constant 0 : index
    %c0_0 = arith.constant 0 : index
    %0 = vector.load %arg2[%c0, %c0_0] : memref<8x256xf32, #tpu.memory_space<vmem>>, vector<8x256xf32>
    %c0_1 = arith.constant 0 : index
    %c0_2 = arith.constant 0 : index
    %1 = vector.load %arg3[%c0_1, %c0_2] : memref<8x256xf32, #tpu.memory_space<vmem>>, vector<8x256xf32>
    %c0_3 = arith.constant 0 : index
    %c0_4 = arith.constant 0 : index
    %2 = vector.load %arg0[%c0_3, %c0_4] : memref<8x3xf32, #tpu.memory_space<vmem>>, vector<8x3xf32>
    %3 = vector.extract_strided_slice %2 {offsets = [0, 0], sizes = [8, 1], strides = [1, 1]} : vector<8x3xf32> to vector<8x1xf32>
    %4 = vector.extract_strided_slice %2 {offsets = [0, 1], sizes = [8, 1], strides = [1, 1]} : vector<8x3xf32> to vector<8x1xf32>
    %5 = vector.extract_strided_slice %2 {offsets = [0, 2], sizes = [8, 1], strides = [1, 1]} : vector<8x3xf32> to vector<8x1xf32>
    %6 = vector.broadcast %3 : vector<8x1xf32> to vector<8x256xf32>
    %7 = arith.mulf %6, %0 : vector<8x256xf32>
    %8 = vector.broadcast %4 : vector<8x1xf32> to vector<8x256xf32>
    %9 = arith.mulf %8, %1 : vector<8x256xf32>
    %10 = arith.addf %7, %9 : vector<8x256xf32>
    %11 = tpu.iota {dimensions = array<i32: 1>} : vector<1x256xi32>
    %c15_i32 = arith.constant 15 : i32
    %12 = vector.broadcast %c15_i32 : i32 to vector<1x256xi32>
    %13 = arith.andi %11, %12 : vector<1x256xi32>
    %c17_i32 = arith.constant 17 : i32
    %14 = tpu.dynamic_rotate %10 by %c17_i32 dim 1 : vector<8x256xf32>, i32 -> vector<8x256xf32>
    %c1_i32 = arith.constant 1 : i32
    %15 = vector.broadcast %c1_i32 : i32 to vector<1x256xi32>
    %16 = arith.cmpi sge, %13, %15 : vector<1x256xi32>
    %c17_i32_5 = arith.constant 17 : i32
    %17 = vector.broadcast %c17_i32_5 : i32 to vector<1x256xi32>
    %18 = arith.cmpi sge, %11, %17 : vector<1x256xi32>
    %19 = arith.andi %16, %18 : vector<1x256xi1>
    %cst = arith.constant 0.000000e+00 : f32
    %20 = vector.shape_cast %19 : vector<1x256xi1> to vector<1x256xi1>
    %21 = vector.broadcast %20 : vector<1x256xi1> to vector<8x256xi1>
    %22 = vector.broadcast %cst : f32 to vector<8x256xf32>
    %23 = arith.select %21, %14, %22 : vector<8x256xi1>, vector<8x256xf32>
    %c16_i32 = arith.constant 16 : i32
    %24 = tpu.dynamic_rotate %10 by %c16_i32 dim 1 : vector<8x256xf32>, i32 -> vector<8x256xf32>
    %c16_i32_6 = arith.constant 16 : i32
    %25 = vector.broadcast %c16_i32_6 : i32 to vector<1x256xi32>
    %26 = arith.cmpi sge, %11, %25 : vector<1x256xi32>
    %cst_7 = arith.constant 0.000000e+00 : f32
    %27 = vector.shape_cast %26 : vector<1x256xi1> to vector<1x256xi1>
    %28 = vector.broadcast %27 : vector<1x256xi1> to vector<8x256xi1>
    %29 = vector.broadcast %cst_7 : f32 to vector<8x256xf32>
    %30 = arith.select %28, %24, %29 : vector<8x256xi1>, vector<8x256xf32>
    %c15_i32_8 = arith.constant 15 : i32
    %31 = tpu.dynamic_rotate %10 by %c15_i32_8 dim 1 : vector<8x256xf32>, i32 -> vector<8x256xf32>
    %c15_i32_9 = arith.constant 15 : i32
    %32 = vector.broadcast %c15_i32_9 : i32 to vector<1x256xi32>
    %33 = arith.cmpi slt, %13, %32 : vector<1x256xi32>
    %c15_i32_10 = arith.constant 15 : i32
    %34 = vector.broadcast %c15_i32_10 : i32 to vector<1x256xi32>
    %35 = arith.cmpi sge, %11, %34 : vector<1x256xi32>
    %36 = arith.andi %33, %35 : vector<1x256xi1>
    %cst_11 = arith.constant 0.000000e+00 : f32
    %37 = vector.shape_cast %36 : vector<1x256xi1> to vector<1x256xi1>
    %38 = vector.broadcast %37 : vector<1x256xi1> to vector<8x256xi1>
    %39 = vector.broadcast %cst_11 : f32 to vector<8x256xf32>
    %40 = arith.select %38, %31, %39 : vector<8x256xi1>, vector<8x256xf32>
    %c1_i32_12 = arith.constant 1 : i32
    %41 = tpu.dynamic_rotate %10 by %c1_i32_12 dim 1 : vector<8x256xf32>, i32 -> vector<8x256xf32>
    %c1_i32_13 = arith.constant 1 : i32
    %42 = vector.broadcast %c1_i32_13 : i32 to vector<1x256xi32>
    %43 = arith.cmpi sge, %13, %42 : vector<1x256xi32>
    %c1_i32_14 = arith.constant 1 : i32
    %44 = vector.broadcast %c1_i32_14 : i32 to vector<1x256xi32>
    %45 = arith.cmpi sge, %11, %44 : vector<1x256xi32>
    %46 = arith.andi %43, %45 : vector<1x256xi1>
    %cst_15 = arith.constant 0.000000e+00 : f32
    %47 = vector.shape_cast %46 : vector<1x256xi1> to vector<1x256xi1>
    %48 = vector.broadcast %47 : vector<1x256xi1> to vector<8x256xi1>
    %49 = vector.broadcast %cst_15 : f32 to vector<8x256xf32>
    %50 = arith.select %48, %41, %49 : vector<8x256xi1>, vector<8x256xf32>
    %c255_i32 = arith.constant 255 : i32
    %51 = tpu.dynamic_rotate %10 by %c255_i32 dim 1 : vector<8x256xf32>, i32 -> vector<8x256xf32>
    %c15_i32_16 = arith.constant 15 : i32
    %52 = vector.broadcast %c15_i32_16 : i32 to vector<1x256xi32>
    %53 = arith.cmpi slt, %13, %52 : vector<1x256xi32>
    %c255_i32_17 = arith.constant 255 : i32
    %54 = vector.broadcast %c255_i32_17 : i32 to vector<1x256xi32>
    %55 = arith.cmpi slt, %11, %54 : vector<1x256xi32>
    %56 = arith.andi %53, %55 : vector<1x256xi1>
    %cst_18 = arith.constant 0.000000e+00 : f32
    %57 = vector.shape_cast %56 : vector<1x256xi1> to vector<1x256xi1>
    %58 = vector.broadcast %57 : vector<1x256xi1> to vector<8x256xi1>
    %59 = vector.broadcast %cst_18 : f32 to vector<8x256xf32>
    %60 = arith.select %58, %51, %59 : vector<8x256xi1>, vector<8x256xf32>
    %c241_i32 = arith.constant 241 : i32
    %61 = tpu.dynamic_rotate %10 by %c241_i32 dim 1 : vector<8x256xf32>, i32 -> vector<8x256xf32>
    %c1_i32_19 = arith.constant 1 : i32
    %62 = vector.broadcast %c1_i32_19 : i32 to vector<1x256xi32>
    %63 = arith.cmpi sge, %13, %62 : vector<1x256xi32>
    %c241_i32_20 = arith.constant 241 : i32
    %64 = vector.broadcast %c241_i32_20 : i32 to vector<1x256xi32>
    %65 = arith.cmpi slt, %11, %64 : vector<1x256xi32>
    %66 = arith.andi %63, %65 : vector<1x256xi1>
    %cst_21 = arith.constant 0.000000e+00 : f32
    %67 = vector.shape_cast %66 : vector<1x256xi1> to vector<1x256xi1>
    %68 = vector.broadcast %67 : vector<1x256xi1> to vector<8x256xi1>
    %69 = vector.broadcast %cst_21 : f32 to vector<8x256xf32>
    %70 = arith.select %68, %61, %69 : vector<8x256xi1>, vector<8x256xf32>
    %c240_i32 = arith.constant 240 : i32
    %71 = tpu.dynamic_rotate %10 by %c240_i32 dim 1 : vector<8x256xf32>, i32 -> vector<8x256xf32>
    %c240_i32_22 = arith.constant 240 : i32
    %72 = vector.broadcast %c240_i32_22 : i32 to vector<1x256xi32>
    %73 = arith.cmpi slt, %11, %72 : vector<1x256xi32>
    %cst_23 = arith.constant 0.000000e+00 : f32
    %74 = vector.shape_cast %73 : vector<1x256xi1> to vector<1x256xi1>
    %75 = vector.broadcast %74 : vector<1x256xi1> to vector<8x256xi1>
    %76 = vector.broadcast %cst_23 : f32 to vector<8x256xf32>
    %77 = arith.select %75, %71, %76 : vector<8x256xi1>, vector<8x256xf32>
    %c239_i32 = arith.constant 239 : i32
    %78 = tpu.dynamic_rotate %10 by %c239_i32 dim 1 : vector<8x256xf32>, i32 -> vector<8x256xf32>
    %c15_i32_24 = arith.constant 15 : i32
    %79 = vector.broadcast %c15_i32_24 : i32 to vector<1x256xi32>
    %80 = arith.cmpi slt, %13, %79 : vector<1x256xi32>
    %c239_i32_25 = arith.constant 239 : i32
    %81 = vector.broadcast %c239_i32_25 : i32 to vector<1x256xi32>
    %82 = arith.cmpi slt, %11, %81 : vector<1x256xi32>
    %83 = arith.andi %80, %82 : vector<1x256xi1>
    %cst_26 = arith.constant 0.000000e+00 : f32
    %84 = vector.shape_cast %83 : vector<1x256xi1> to vector<1x256xi1>
    %85 = vector.broadcast %84 : vector<1x256xi1> to vector<8x256xi1>
    %86 = vector.broadcast %cst_26 : f32 to vector<8x256xf32>
    %87 = arith.select %85, %78, %86 : vector<8x256xi1>, vector<8x256xf32>
    %88 = tpu.concatenate %23, %30, %40, %50, %10, %60, %70, %77, %87 in 0 : vector<8x256xf32>, vector<8x256xf32>, vector<8x256xf32>, vector<8x256xf32>, vector<8x256xf32>, vector<8x256xf32>, vector<8x256xf32>, vector<8x256xf32>, vector<8x256xf32> -> vector<72x256xf32>
    %89 = arith.truncf %88 : vector<72x256xf32> to vector<72x256xbf16>
    %c0_27 = arith.constant 0 : index
    %c0_28 = arith.constant 0 : index
    %90 = vector.load %arg1[%c0_27, %c0_28] : memref<8x72xbf16, #tpu.memory_space<vmem>>, vector<8x72xbf16>
    %cst_29 = arith.constant dense<0.000000e+00> : vector<8x256xf32>
    %91 = tpu.matmul %90, %89, %cst_29 {dimension_numbers = #tpu.dot_dimension_numbers<[1], [0], [0], [1], [0, 0, 1, 1], [], []>} : vector<8x72xbf16>, vector<72x256xbf16>, vector<8x256xf32> -> vector<8x256xf32>
    %92 = vector.broadcast %5 : vector<8x1xf32> to vector<8x256xf32>
    %93 = arith.addf %91, %92 : vector<8x256xf32>
    %94 = arith.subf %1, %93 : vector<8x256xf32>
    %95 = math.absf %94 : vector<8x256xf32>
    %96 = vector.shape_cast %95 : vector<8x256xf32> to vector<1x8x256xf32>
    %cst_30 = arith.constant dense<0.000000e+00> : vector<1xf32>
    %97 = vector.multi_reduction <add>, %96, %cst_30 [1, 2] : vector<1x8x256xf32> to vector<1xf32>
    %98 = vector.shape_cast %97 : vector<1xf32> to vector<1x1x1xf32>
    %99 = vector.extract %98[0, 0, 0] : f32 from vector<1x1x1xf32>
    %cst_31 = arith.constant 4.8828125E-4 : f32
    %100 = arith.mulf %99, %cst_31 : f32
    %c0_32 = arith.constant 0 : index
    %c0_33 = arith.constant 0 : index
    %101 = memref.load %arg4[%c0_32, %c0_33] : memref<1x1xf32, #tpu.memory_space<smem>>
    memref.store %100, %arg4[%c0_32, %c0_33] : memref<1x1xf32, #tpu.memory_space<smem>>
    return
  }
}

</mosaic_0001>

<llo_original>
// kernel: tpu_custom_call.1
$region0: #{tpu_custom_call.1}
  #allocation0 [shape = 'u32[]', space=smem, size = 0x4, offset = 0x4, fixed_abs, tag = 'smem constant byte address 0x4 - core index']
  #allocation1 [shape = 'u32[144,128]{1,0:T(1,128)}', space=vmem, size = 0x12000, scoped, tag = 'internal scratch']
  %s0 = inlined_call_operand.vmem [shape: f32[8,3], index: 0, kind: input, shape index: {}]
  %s1 = inlined_call_operand.hbm [shape: bf16[8,72], index: 1, kind: input, shape index: {}]
  %s2 = inlined_call_operand.vmem [shape: f32[8,256], index: 2, kind: input, shape index: {}]
  %s3 = inlined_call_operand.hbm [shape: f32[8,256], index: 3, kind: input, shape index: {}]
  %s4 = inlined_call_operand.hbm [shape: f32[1,1], index: 4, kind: output, shape index: {}]
  %s5 = sld [smem:[#allocation0]]
  $region34: #{tpu_custom_call.1} parent=0
    _
  %s7 = ssub.s32 1, %s5
  %s8 = scalar_select 0, %s7, %s5
  $region1: #{tpu_custom_call.1} parent=0
    #allocation2 [shape = 'u8[2048]{0}', space=vmem, size = 0x800, scoped, tag = 'input window, operand 1, single buffered']
    #allocation3 [shape = 's32[1]{0}', space=sflag, size = 0x4, scoped, tag = 'scoped memory for tpu_custom_call.1']
    #allocation4 [shape = 's32[1]{0}', space=sflag, size = 0x4, scoped, tag = 'scoped memory for tpu_custom_call.1']
    #allocation5 [shape = 'u8[8192]{0}', space=vmem, size = 0x2000, scoped, tag = 'input window, operand 3, single buffered']
    #allocation6 [shape = 's32[1]{0}', space=sflag, size = 0x4, scoped, tag = 'scoped memory for tpu_custom_call.1']
    #allocation7 [shape = 'u8[512]{0}', space=smem, size = 0x200, scoped, tag = 'output window, operand 0, single buffered']
    %9 = vsyncpa [#allocation3], 0
    %10 = vsyncpa [#allocation6], 0
    %11 = vsyncpa [#allocation4], 0
    // Predicated region
    $region2: #{tpu_custom_call.1} parent=1 // pred_check
      _
    $region3: #{tpu_custom_call.1} parent=1 // pred_check_branch
      %13 = sbr.rel (0) target = $region5
    $region4: #{tpu_custom_call.1} parent=1 // pred_region
      _
    $region5: #{tpu_custom_call.1} parent=1 // pred_fallthru
      _
    // Predicated region
    $region6: #{tpu_custom_call.1} parent=1 // pred_check
      _
    $region7: #{tpu_custom_call.1} parent=1 // pred_check_branch
      %15 = sbr.rel (0) target = $region9
    $region8: #{tpu_custom_call.1} parent=1 // pred_region
      %s17 = ssub.s32 64, 64
      %18 = vsyncadd [#allocation3], %s17
      %s20 = sshll.u32 [#allocation2], 4
      %s21 = int_to_ptr.vmem [resolvable:$true] %s20
      %23 = dma.hbm_to_vmem [thread:$0]  %s1, 64, %s21, [#allocation3]
    $region9: #{tpu_custom_call.1} parent=1 // pred_fallthru
      _
    // Predicated region
    $region10: #{tpu_custom_call.1} parent=1 // pred_check
      _
    $region11: #{tpu_custom_call.1} parent=1 // pred_check_branch
      %25 = sbr.rel (0) target = $region13
    $region12: #{tpu_custom_call.1} parent=1 // pred_region
      _
    $region13: #{tpu_custom_call.1} parent=1 // pred_fallthru
      _
    // Predicated region
    $region14: #{tpu_custom_call.1} parent=1 // pred_check
      _
    $region15: #{tpu_custom_call.1} parent=1 // pred_check_branch
      %27 = sbr.rel (0) target = $region17
    $region16: #{tpu_custom_call.1} parent=1 // pred_region
      %s29 = ssub.s32 256, 256
      %30 = vsyncadd [#allocation6], %s29
      %s32 = sshll.u32 [#allocation5], 4
      %s33 = int_to_ptr.vmem [resolvable:$true] %s32
      %35 = dma.hbm_to_vmem [thread:$0]  %s3, 256, %s33, [#allocation6]
    $region17: #{tpu_custom_call.1} parent=1 // pred_fallthru
      _
    // Predicated region
    $region18: #{tpu_custom_call.1} parent=1 // pred_check
      _
    $region19: #{tpu_custom_call.1} parent=1 // pred_check_branch
      %37 = sbr.rel (0) target = $region21
    $region20: #{tpu_custom_call.1} parent=1 // pred_region
      %38 = dma.done [#allocation3], 64
    $region21: #{tpu_custom_call.1} parent=1 // pred_fallthru
      _
    // Predicated region
    $region22: #{tpu_custom_call.1} parent=1 // pred_check
      _
    $region23: #{tpu_custom_call.1} parent=1 // pred_check_branch
      %40 = sbr.rel (0) target = $region25
    $region24: #{tpu_custom_call.1} parent=1 // pred_region
      %41 = dma.done [#allocation6], 256
    $region25: #{tpu_custom_call.1} parent=1 // pred_fallthru
      _
    %v43 = vld [vmem:[%s2] sm:$0xff]
    %v44 = vld [vmem:[%s2 + $0x8] sm:$0xff]
    %v45 = vld [vmem:[#allocation5] sm:$0xff]
    %v46 = vld [vmem:[#allocation5 + $0x8] sm:$0xff]
    %v47 = vld [vmem:[%s0] sm:$0xff]
    %49 = vset.pattern.permute.xlu0 0
    %50 = vperm.xlu0 %49, %v47
    %v51 = vpop.permute.xlu0 %50
    %v53 = vmul.f32 %v51, %v43
    %v54 = vmul.f32 %v51, %v44
    %55 = vset.pattern.permute.xlu0 1
    %56 = vperm.xlu0 %55, %v47
    %v57 = vpop.permute.xlu0 %56
    %v59 = vmul.f32 %v57, %v45
    %v60 = vmul.f32 %v57, %v46
    %v61 = vadd.f32 %v53, %v59
    %v62 = vadd.f32 %v54, %v60
    %v63 = vlaneseq
    %v64 = vand.u32 %v63, 127
    %v65 = vadd.s32 %v64, 128
    %v66 = vand.u32 %v64, 15
    %v67 = vand.u32 %v65, 15
    %68 = vrot.lane.b32.xlu0 %v61, 17
    %v69 = vpop.permute.xlu0 %68
    %70 = vrot.lane.b32.xlu0 %v62, 17
    %v71 = vpop.permute.xlu0 %70
    %vm72 = vcmp.lt.s32.totalorder %v64, 17
    %v73 = vsel %vm72, %v69, %v71
    %v74 = vsel %vm72, %v71, %v69
    %vm75 = vcmp.ge.s32.totalorder %v66, 1
    %vm76 = vcmp.ge.s32.totalorder %v67, 1
    %vm77 = vcmp.ge.s32.totalorder %v64, 17
    %vm78 = vcmp.ge.s32.totalorder %v65, 17
    %vm79 = vmand %vm75, %vm77
    %vm80 = vmand %vm76, %vm78
    %v81 = vsel %vm79, 1, 0
    %v82 = vsel %vm80, 1, 0
    %vm83 = vcmp.eq.s32.totalorder %v81, 1
    %vm84 = vcmp.eq.s32.totalorder %v82, 1
    %v85 = vsel %vm83, %v74, 0.0
    %v86 = vsel %vm84, %v73, 0.0
    %87 = vrot.lane.b32.xlu0 %v61, 16
    %v88 = vpop.permute.xlu0 %87
    %89 = vrot.lane.b32.xlu0 %v62, 16
    %v90 = vpop.permute.xlu0 %89
    %vm91 = vcmp.lt.s32.totalorder %v64, 16
    %v92 = vsel %vm91, %v88, %v90
    %v93 = vsel %vm91, %v90, %v88
    %vm94 = vcmp.ge.s32.totalorder %v64, 16
    %vm95 = vcmp.ge.s32.totalorder %v65, 16
    %v96 = vsel %vm94, 1, 0
    %v97 = vsel %vm95, 1, 0
    %vm98 = vcmp.eq.s32.totalorder %v96, 1
    %vm99 = vcmp.eq.s32.totalorder %v97, 1
    %v100 = vsel %vm98, %v93, 0.0
    %v101 = vsel %vm99, %v92, 0.0
    %102 = vrot.lane.b32.xlu0 %v61, 15
    %v103 = vpop.permute.xlu0 %102
    %104 = vrot.lane.b32.xlu0 %v62, 15
    %v105 = vpop.permute.xlu0 %104
    %vm106 = vcmp.lt.s32.totalorder %v64, 15
    %v107 = vsel %vm106, %v103, %v105
    %v108 = vsel %vm106, %v105, %v103
    %vm109 = vcmp.lt.s32.totalorder %v66, 15
    %vm110 = vcmp.lt.s32.totalorder %v67, 15
    %vm111 = vcmp.ge.s32.totalorder %v64, 15
    %vm112 = vcmp.ge.s32.totalorder %v65, 15
    %vm113 = vmand %vm109, %vm111
    %vm114 = vmand %vm110, %vm112
    %v115 = vsel %vm113, 1, 0
    %v116 = vsel %vm114, 1, 0
    %vm117 = vcmp.eq.s32.totalorder %v115, 1
    %vm118 = vcmp.eq.s32.totalorder %v116, 1
    %v119 = vsel %vm117, %v108, 0.0
    %v120 = vsel %vm118, %v107, 0.0
    %121 = vrot.lane.b32.xlu0 %v61, 1
    %v122 = vpop.permute.xlu0 %121
    %123 = vrot.lane.b32.xlu0 %v62, 1
    %v124 = vpop.permute.xlu0 %123
    %vm125 = vcmp.lt.s32.totalorder %v64, 1
    %v126 = vsel %vm125, %v122, %v124
    %v127 = vsel %vm125, %v124, %v122
    %vm128 = vcmp.ge.s32.totalorder %v64, 1
    %vm129 = vcmp.ge.s32.totalorder %v65, 1
    %vm130 = vmand %vm75, %vm128
    %vm131 = vmand %vm76, %vm129
    %v132 = vsel %vm130, 1, 0
    %v133 = vsel %vm131, 1, 0
    %vm134 = vcmp.eq.s32.totalorder %v132, 1
    %vm135 = vcmp.eq.s32.totalorder %v133, 1
    %v136 = vsel %vm134, %v127, 0.0
    %v137 = vsel %vm135, %v126, 0.0
    %138 = vrot.lane.b32.xlu0 %v61, 127
    %v139 = vpop.permute.xlu0 %138
    %140 = vrot.lane.b32.xlu0 %v62, 127
    %v141 = vpop.permute.xlu0 %140
    %vm142 = vcmp.lt.s32.totalorder %v64, 127
    %v143 = vsel %vm142, %v139, %v141
    %v144 = vsel %vm142, %v141, %v139
    %vm145 = vcmp.lt.s32.totalorder %v64, 255
    %vm146 = vcmp.lt.s32.totalorder %v65, 255
    %vm147 = vmand %vm109, %vm145
    %vm148 = vmand %vm110, %vm146
    %v149 = vsel %vm147, 1, 0
    %v150 = vsel %vm148, 1, 0
    %vm151 = vcmp.eq.s32.totalorder %v149, 1
    %vm152 = vcmp.eq.s32.totalorder %v150, 1
    %v153 = vsel %vm151, %v143, 0.0
    %v154 = vsel %vm152, %v144, 0.0
    %155 = vrot.lane.b32.xlu0 %v61, 113
    %v156 = vpop.permute.xlu0 %155
    %157 = vrot.lane.b32.xlu0 %v62, 113
    %v158 = vpop.permute.xlu0 %157
    %vm159 = vcmp.lt.s32.totalorder %v64, 113
    %v160 = vsel %vm159, %v156, %v158
    %v161 = vsel %vm159, %v158, %v156
    %vm162 = vcmp.lt.s32.totalorder %v64, 241
    %vm163 = vcmp.lt.s32.totalorder %v65, 241
    %vm164 = vmand %vm75, %vm162
    %vm165 = vmand %vm76, %vm163
    %v166 = vsel %vm164, 1, 0
    %v167 = vsel %vm165, 1, 0
    %vm168 = vcmp.eq.s32.totalorder %v166, 1
    %vm169 = vcmp.eq.s32.totalorder %v167, 1
    %v170 = vsel %vm168, %v160, 0.0
    %v171 = vsel %vm169, %v161, 0.0
    %172 = vrot.lane.b32.xlu0 %v61, 112
    %v173 = vpop.permute.xlu0 %172
    %174 = vrot.lane.b32.xlu0 %v62, 112
    %v175 = vpop.permute.xlu0 %174
    %vm176 = vcmp.lt.s32.totalorder %v64, 112
    %v177 = vsel %vm176, %v173, %v175
    %v178 = vsel %vm176, %v175, %v173
    %vm179 = vcmp.lt.s32.totalorder %v64, 240
    %vm180 = vcmp.lt.s32.totalorder %v65, 240
    %v181 = vsel %vm179, 1, 0
    %v182 = vsel %vm180, 1, 0
    %vm183 = vcmp.eq.s32.totalorder %v181, 1
    %vm184 = vcmp.eq.s32.totalorder %v182, 1
    %v185 = vsel %vm183, %v177, 0.0
    %v186 = vsel %vm184, %v178, 0.0
    %187 = vrot.lane.b32.xlu0 %v61, 111
    %v188 = vpop.permute.xlu0 %187
    %189 = vrot.lane.b32.xlu0 %v62, 111
    %v190 = vpop.permute.xlu0 %189
    %vm191 = vcmp.lt.s32.totalorder %v64, 111
    %v192 = vsel %vm191, %v188, %v190
    %v193 = vsel %vm191, %v190, %v188
    %vm194 = vcmp.lt.s32.totalorder %v64, 239
    %vm195 = vcmp.lt.s32.totalorder %v65, 239
    %vm196 = vmand %vm109, %vm194
    %vm197 = vmand %vm110, %vm195
    %v198 = vsel %vm196, 1, 0
    %v199 = vsel %vm197, 1, 0
    %vm200 = vcmp.eq.s32.totalorder %v198, 1
    %vm201 = vcmp.eq.s32.totalorder %v199, 1
    %v202 = vsel %vm200, %v192, 0.0
    %v203 = vsel %vm201, %v193, 0.0
    %v204 = vpack.c.bf16 %v100, %v85
    %v205 = vpack.c.bf16 %v101, %v86
    %v206 = vpack.c.bf16 %v136, %v119
    %v207 = vpack.c.bf16 %v137, %v120
    %v208 = vpack.c.bf16 %v153, %v61
    %v209 = vpack.c.bf16 %v154, %v62
    %v210 = vpack.c.bf16 %v185, %v170
    %v211 = vpack.c.bf16 %v186, %v171
    %v212 = vpack.c.bf16 %v202, %v202
    %v213 = vpack.c.bf16 %v203, %v203
    %v214 = vld [vmem:[#allocation2] sm:$0xf]
    %215 = vset.pattern.permute.xlu0 2
    %216 = vperm.xlu0 %215, %v47
    %v217 = vpop.permute.xlu0 %216
    %vm219 = vcmask 588800
    %v221 = vsel %vm219, %v214, 0
    %vm223 = vcmask 1043456
    %v225 = vsel %vm223, %v212, 0
    %v228 = vsel %vm223, %v213, 0
    %230 = vmatprep.subr.bf16.mxu0 %v205
    %231 = vmatpush1.bf16.msra.mxu0 %v204
    %232 = vmatprep.subr.bf16.mxu0 %v207
    %233 = vmatpush1.bf16.msra.mxu0 %v206
    %234 = vmatprep.subr.bf16.mxu0 %v209
    %235 = vmatpush1.bf16.msra.mxu0 %v208
    %236 = vmatprep.subr.bf16.mxu0 %v211
    %237 = vmatpush1.bf16.msra.mxu0 %v210
    %238 = vmatprep.subr.bf16.mxu0 %v228
    %239 = vmatpush1.bf16.msra.mxu0 %v225
    %240 = vmatprep.subr.bf16.mxu0 0
    %241 = vmatpush1.bf16.msra.mxu0 0
    %242 = vmatprep.subr.bf16.mxu0 0
    %243 = vmatpush1.bf16.msra.mxu0 0
    %244 = vmatprep.subr.bf16.mxu0 0
    %245 = vmatpush1.bf16.msra.mxu0 0
    %246 = vmatprep.subr.bf16.mxu0 0
    %247 = vmatpush1.bf16.msra.mxu0 0
    %248 = vmatprep.subr.bf16.mxu0 0
    %249 = vmatpush1.bf16.msra.mxu0 0
    %250 = vmatprep.subr.bf16.mxu0 0
    %251 = vmatpush1.bf16.msra.mxu0 0
    %252 = vmatprep.subr.bf16.mxu0 0
    %253 = vmatpush1.bf16.msra.mxu0 0
    %254 = vmatprep.subr.bf16.mxu0 0
    %255 = vmatpush1.bf16.msra.mxu0 0
    %256 = vmatprep.subr.bf16.mxu0 0
    %257 = vmatpush1.bf16.msra.mxu0 0
    %258 = vmatprep.subr.bf16.mxu0 0
    %259 = vmatpush1.bf16.msra.mxu0 0
    %260 = vmatprep.subr.bf16.mxu0 0
    %261 = vmatpush1.bf16.msra.mxu0 0
    %262 = vmatprep.mubr.bf16.mxu0 0
    %263 = vmatmul.mubr.bf16.gmra.mrb[0].mxu0 %v221
    %v264 = vpop.f32.mrb[0].mxu0
    %v265 = vadd.f32 %v217, %v264
    %v266 = vpop.f32.mrb[0].mxu0
    %v267 = vadd.f32 %v217, %v266
    %v268 = vpop.f32.mrb[0].mxu0
    %v269 = vpop.f32.mrb[0].mxu0
    %270 = vdwg.mxu0
    %v271 = vsub.f32 %v45, %v265
    %v272 = vsub.f32 %v46, %v267
    %v273 = vand.u32 2147483647, %v271
    %v274 = vand.u32 2147483647, %v272
    %v275 = vadd.f32 %v273, %v274
    %276 = vadd.xlane.f32.xlu0 %v275
    %v277 = vpop.xlane.xlu0 %276
    %v278 = vrot.slane %v277, 4
    %v279 = vadd.f32 %v277, %v278
    %v280 = vrot.slane %v279, 2
    %v281 = vadd.f32 %v279, %v280
    %v282 = vrot.slane %v281, 1
    %v283 = vadd.f32 %v281, %v282
    %s284 = vtos %v283
    %s285 = smul.f32 %s284, 0.00048828125
    %s286 = scalar_lea.smem [#allocation7], 0
    %287 = sst [smem:[%s286]] %s285
    // Predicated region
    $region26: #{tpu_custom_call.1} parent=1 // pred_check
      _
    $region27: #{tpu_custom_call.1} parent=1 // pred_check_branch
      %289 = sbr.rel (0) target = $region29
    $region28: #{tpu_custom_call.1} parent=1 // pred_region
      %s291 = ssub.s32 16, 16
      %292 = vsyncadd [#allocation4], %s291
      %295 = dma.smem_to_hbm [#allocation7], 16, %s4, [#allocation4]
    $region29: #{tpu_custom_call.1} parent=1 // pred_fallthru
      _
    // Predicated region
    $region30: #{tpu_custom_call.1} parent=1 // pred_check
      _
    $region31: #{tpu_custom_call.1} parent=1 // pred_check_branch
      %297 = sbr.rel (0) target = $region33
    $region32: #{tpu_custom_call.1} parent=1 // pred_region
      %298 = dma.done [#allocation4], 16
    $region33: #{tpu_custom_call.1} parent=1 // pred_fallthru
      _
    %299 = sfence
    %300 = vsyncpa [#allocation3], 1
    %301 = vsyncpa [#allocation6], 1
    %302 = vsyncpa [#allocation4], 1

</llo_original>
